<compile_context>
chip_gen: v6e
topology: v6e:2x2x1
jax: 0.10.0
libtpu: 0.0.40
codegen_flags: <defaults>
</compile_context>

<pallas_src>
import math
import functools

import jax
import jax.numpy as jnp
from jax import lax
from jax.experimental import pallas as pl
from jax.experimental.pallas import tpu as pltpu


def _lk_tile(l_k, target=512):
    """Largest L_K tile <= target that divides L_K and keeps the sublane extent a
    multiple of 8 (or falls back to the full extent)."""
    if l_k <= target:
        return l_k
    for t in range(target, 7, -1):
        if l_k % t == 0 and t % 8 == 0:
            return t
    return l_k


# ----------------------------- kernel 1: sparsity measure -----------------------------
def _measure_kernel(q_ref, k_ref, cnt_ref, m_ref, max_ref, sum_ref, *, inv_lk):
    """Per (batch, head) grid step, tiled over L_K (innermost "arbitrary" axis):
         S^T      = K_tile @ Q^T                          (bf16 x bf16 -> f32 accumulate)
         run_max  = max(run_max, max over sampled keys of S^T)   per query (lane) column
         run_sum += sum_k cnt[k, q] * S^T[k, q]           (sample-multiplicity weights)
       and on the last tile:
         M[b, h, q] = run_max[q] - run_sum[q] / L_K
       cnt[k, q] is the multiplicity of key k in torch.randint's sample for query q
       (shared across B and H, exactly like the reference), so the sampled max / sum are
       numerically identical to the PyTorch gather formulation."""
    kt = pl.program_id(2)

    @pl.when(kt == 0)
    def _init():
        max_ref[...] = jnp.full_like(max_ref, -jnp.inf)
        sum_ref[...] = jnp.zeros_like(sum_ref)

    q_h = q_ref[0, 0]                      # (L_Q, D)   bf16
    k_blk = k_ref[0, 0]                    # (tk, D)    bf16
    cnt_blk = cnt_ref[...]                 # (tk, L_Q)  bf16 small-integer counts

    # scores transposed: keys on sublanes, queries on lanes -> reductions land lane-dense
    s_t = lax.dot_general(k_blk, q_h, (((1,), (1,)), ((), ())),
                          preferred_element_type=jnp.float32)            # (tk, L_Q) f32

    sampled = cnt_blk > 0
    blk_max = jnp.max(jnp.where(sampled, s_t, -jnp.inf), axis=0, keepdims=True)
    blk_sum = jnp.sum(s_t * cnt_blk, axis=0, keepdims=True)              # bf16 -> f32 promote

    max_ref[...] = jnp.maximum(max_ref[...], blk_max)
    sum_ref[...] = sum_ref[...] + blk_sum

    @pl.when(kt == pl.num_programs(2) - 1)
    def _finalize():
        m_ref[0, 0] = max_ref[...] - sum_ref[...] * inv_lk               # (1, L_Q) lane-dense


# ----------------------------- kernel 2: sparse context -------------------------------
def _context_kernel(idx_ref, q_ref, k_ref, v_ref, out_ref, qr_ref, idxcol_ref, upd_ref,
                    *, H, u, scale):
    """Per (batch, head) grid step:
         ctx0     = cumsum(V, axis=0)                (in-kernel lower-tri ones @ V)
         Q_reduce = Q[idx]                           (u dynamic row loads, idx from SMEM)
         scores   = (Q_reduce @ K^T) * scale, masked_fill(k > idx, -inf)   [ProbMask]
         attn     = softmax(scores)
         ctx[idx] = attn @ V                         (u dynamic row stores)."""
    b = pl.program_id(0)
    h = pl.program_id(1)

    k_h = k_ref[0, 0]                      # (L_K, D) bf16
    v_h = v_ref[0, 0]                      # (L_V, D) bf16
    L_K = k_h.shape[0]
    L_V = v_h.shape[0]

    # initial context = cumsum(V, axis=0); tri built in-kernel (no (L, L) HBM input/DMA)
    row_ids = lax.broadcasted_iota(jnp.int32, (L_V, L_V), 0)
    col_ids = lax.broadcasted_iota(jnp.int32, (L_V, L_V), 1)
    tri = (row_ids >= col_ids).astype(v_h.dtype)
    ctx0 = jnp.dot(tri, v_h, preferred_element_type=jnp.float32)         # (L_V, D) f32
    out_ref[0, 0] = ctx0.astype(out_ref.dtype)

    # gather the u selected query rows and their indices (SMEM scalars -> VMEM scratch)
    base = (b * H + h) * u

    def _gather(j, carry):
        row = idx_ref[base + j]
        qr_ref[pl.ds(j, 1), :] = q_ref[0, 0, pl.ds(row, 1), :]
        idxcol_ref[pl.ds(j, 1), :] = jnp.broadcast_to(row, (1, 1)).astype(jnp.int32)
        return carry

    lax.fori_loop(0, u, _gather, 0, unroll=True)

    # sparse attention for the selected queries (single batched MXU matmuls, no one-hots)
    scores = lax.dot_general(qr_ref[...], k_h, (((1,), (1,)), ((), ())),
                             preferred_element_type=jnp.float32) * scale  # (u, L_K) f32
    kcol = lax.broadcasted_iota(jnp.int32, (u, L_K), 1)
    scores = jnp.where(kcol > idxcol_ref[...], -jnp.inf, scores)          # ProbMask
    smax = jnp.max(scores, axis=-1, keepdims=True)
    e = jnp.exp(scores - smax)
    attn = e * pl.reciprocal(jnp.sum(e, axis=-1, keepdims=True), approx=True)
    upd_ref[...] = jnp.dot(attn.astype(v_h.dtype), v_h,
                           preferred_element_type=jnp.float32)            # (u, D) f32

    # scatter attn @ V into the selected (unique top-k) query rows of the context
    def _scatter(j, carry):
        row = idx_ref[base + j]
        out_ref[0, 0, pl.ds(row, 1), :] = upd_ref[pl.ds(j, 1), :].astype(out_ref.dtype)
        return carry

    lax.fori_loop(0, u, _scatter, 0, unroll=True)


# --------------------------------------- wrapper ---------------------------------------
def prob_attention(queries, keys, values, attn_mask=None, *,
                   factor=5, scale=None, mask_flag=True, sample_key=None):
    """JAX/Pallas forward of ProbAttention (default config). Returns (context, None)."""
    assert mask_flag, "only the default mask_flag=True path is implemented"
    del attn_mask  # reference rebuilds its own ProbMask internally when mask_flag=True

    B, L_Q, H, D = queries.shape
    _, L_K, _, _ = keys.shape
    _, L_V, _, _ = values.shape
    assert L_Q == L_V, "mask_flag=True requires L_Q == L_V (reference assert)"

    out_dtype = queries.dtype
    cdt = jnp.bfloat16      # matmul operand dtype; accumulation is f32 in-kernel

    # head-major layout: one (batch, head) pair per grid step, full-extent (L, D) blocks
    q = jnp.transpose(queries, (0, 2, 1, 3)).astype(cdt)    # (B, H, L_Q, D)
    k = jnp.transpose(keys, (0, 2, 1, 3)).astype(cdt)       # (B, H, L_K, D)
    v = jnp.transpose(values, (0, 2, 1, 3)).astype(cdt)     # (B, H, L_V, D)

    U_part = min(factor * int(math.ceil(math.log(L_K))), L_K)   # sample_k
    u = min(factor * int(math.ceil(math.log(L_Q))), L_Q)        # n_top

    # torch.randint(L_K, (L_Q, sample_k)) analogue (shared across B and H), encoded as a
    # transposed multiplicity matrix via scatter-add (no (L_Q, U_part, L_K) one-hot temp).
    if sample_key is None:
        sample_key = jax.random.PRNGKey(0)
    index_sample = jax.random.randint(sample_key, (L_Q, U_part), 0, L_K)
    qrows = jnp.broadcast_to(jnp.arange(L_Q)[:, None], (L_Q, U_part))
    cnt_t = jnp.zeros((L_K, L_Q), jnp.float32).at[index_sample, qrows].add(1.0)
    cnt_t = cnt_t.astype(cdt)   # small-integer counts (<= U_part): exact in bf16

    lk_tile = _lk_tile(L_K)
    n_kt = L_K // lk_tile
    vmem_cap = 48 * 1024 * 1024   # below v7x's 64 MiB physical VMEM, above the
                                  # 16/32 MiB default scoped limits on v5e/v6e/v7x

    # ---- kernel 1: sparsity measure M, lane-dense (B, H, 1, L_Q) output ---------------
    m = pl.pallas_call(
        functools.partial(_measure_kernel, inv_lk=1.0 / L_K),
        out_shape=jax.ShapeDtypeStruct((B, H, 1, L_Q), jnp.float32),
        grid=(B, H, n_kt),
        in_specs=[
            pl.BlockSpec((1, 1, L_Q, D), lambda b, h, t: (b, h, 0, 0)),
            pl.BlockSpec((1, 1, lk_tile, D), lambda b, h, t: (b, h, t, 0)),
            pl.BlockSpec((lk_tile, L_Q), lambda b, h, t: (t, 0)),   # (b, h)-invariant
        ],
        out_specs=pl.BlockSpec((1, 1, 1, L_Q), lambda b, h, t: (b, h, 0, 0)),
        scratch_shapes=[pltpu.VMEM((1, L_Q), jnp.float32),   # running sampled max
                        pltpu.VMEM((1, L_Q), jnp.float32)],  # running sampled sum
        compiler_params=pltpu.CompilerParams(
            dimension_semantics=("parallel", "parallel", "arbitrary"),
            vmem_limit_bytes=vmem_cap),
    )(q, k, cnt_t)

    # top-u query selection (torch M.topk(n_top, sorted=False)[1]); L_Q is already the
    # last axis of m so no transpose glue is needed before top_k.
    _, idx = lax.top_k(m.reshape(B, H, L_Q), u)               # (B, H, u) int32
    idx_flat = idx.astype(jnp.int32).reshape(-1)              # 1-D: SMEM scalar prefetch

    scale_val = float(scale) if scale is not None else 1.0 / math.sqrt(D)

    # ---- kernel 2: gather / masked softmax / attn @ V / cumsum init / row scatter -----
    ctx = pl.pallas_call(
        functools.partial(_context_kernel, H=H, u=u, scale=scale_val),
        out_shape=jax.ShapeDtypeStruct((B, H, L_Q, D), out_dtype),
        grid_spec=pltpu.PrefetchScalarGridSpec(
            num_scalar_prefetch=1,                            # idx_flat -> SMEM
            grid=(B, H),
            in_specs=[
                pl.BlockSpec((1, 1, L_Q, D), lambda b, h, sidx: (b, h, 0, 0)),
                pl.BlockSpec((1, 1, L_K, D), lambda b, h, sidx: (b, h, 0, 0)),
                pl.BlockSpec((1, 1, L_V, D), lambda b, h, sidx: (b, h, 0, 0)),
            ],
            out_specs=pl.BlockSpec((1, 1, L_Q, D), lambda b, h, sidx: (b, h, 0, 0)),
            scratch_shapes=[pltpu.VMEM((u, D), cdt),           # gathered Q_reduce rows
                            pltpu.VMEM((u, 1), jnp.int32),     # gathered top-k indices
                            pltpu.VMEM((u, D), jnp.float32)],  # attn @ V update rows
        ),
        compiler_params=pltpu.CompilerParams(
            dimension_semantics=("parallel", "parallel"),
            vmem_limit_bytes=vmem_cap),
    )(idx_flat, q, k, v)

    # back to the reference output layout (B, L_Q, H, D); output_attention=False -> None
    return jnp.transpose(ctx, (0, 2, 1, 3)), None


if __name__ == "__main__":
    key = jax.random.PRNGKey(0)
    kq, kk, kv, ks = jax.random.split(key, 4)
    B, L, H, D = 2, 16, 4, 32    # L_Q = L_K = L_V = 16 (required when mask_flag=True)
    queries = jax.random.normal(kq, (B, L, H, D), dtype=jnp.float32)
    keys_in = jax.random.normal(kk, (B, L, H, D), dtype=jnp.float32)
    values = jax.random.normal(kv, (B, L, H, D), dtype=jnp.float32)

    context, attn = prob_attention(queries, keys_in, values, None, sample_key=ks)
    context = jax.block_until_ready(context)

    assert context.shape == (B, L, H, D), context.shape
    assert attn is None
    assert bool(jnp.all(jnp.isfinite(context)))
    print("KERNEL_OK")
</pallas_src>

<mosaic_0001>
module attributes {stable_mosaic.version = 11 : i64} {
  func.func @_measure_kernel(%arg0: i32, %arg1: i32, %arg2: i32, %arg3: memref<1x1x16x32xbf16, #tpu.memory_space<vmem>>, %arg4: memref<1x1x16x32xbf16, #tpu.memory_space<vmem>>, %arg5: memref<16x16xbf16, #tpu.memory_space<vmem>>, %arg6: memref<1x1x1x16xf32, #tpu.memory_space<vmem>>, %arg7: memref<1x16xf32, #tpu.memory_space<vmem>>, %arg8: memref<1x16xf32, #tpu.memory_space<vmem>>) attributes {dimension_semantics = [#tpu.dimension_semantics<parallel>, #tpu.dimension_semantics<parallel>, #tpu.dimension_semantics<arbitrary>], iteration_bounds = array<i64: 2, 4, 1>, scalar_prefetch = 0 : i64, scratch_operands = 2 : i64, tpu.core_type = #tpu.core_type<tc>, window_params = [{transform_indices = @transform_0, window_bounds = array<i64: 1, 1, 16, 32>}, {transform_indices = @transform_1, window_bounds = array<i64: 1, 1, 16, 32>}, {transform_indices = @transform_2, window_bounds = array<i64: 16, 16>}, {transform_indices = @transform_3, window_bounds = array<i64: 1, 1, 1, 16>}]} {
    %c0_i32 = arith.constant 0 : i32
    %0 = arith.cmpi eq, %arg2, %c0_i32 : i32
    %1 = arith.extui %0 : i1 to i32
    %c0_i32_0 = arith.constant 0 : i32
    %2 = arith.cmpi ne, %1, %c0_i32_0 : i32
    scf.if %2 {
      %cst_24 = arith.constant 0xFF800000 : f32
      %28 = vector.broadcast %cst_24 : f32 to vector<1x16xf32>
      %c0_25 = arith.constant 0 : index
      %c0_26 = arith.constant 0 : index
      %29 = vector.load %arg7[%c0_25, %c0_26] : memref<1x16xf32, #tpu.memory_space<vmem>>, vector<1x16xf32>
      tpu.vector_store %arg7[%c0_25, %c0_26], %28 {strides = array<i32>} : memref<1x16xf32, #tpu.memory_space<vmem>>, vector<1x16xf32>,
      %cst_27 = arith.constant 0.000000e+00 : f32
      %30 = vector.broadcast %cst_27 : f32 to vector<1x16xf32>
      %c0_28 = arith.constant 0 : index
      %c0_29 = arith.constant 0 : index
      %31 = vector.load %arg8[%c0_28, %c0_29] : memref<1x16xf32, #tpu.memory_space<vmem>>, vector<1x16xf32>
      tpu.vector_store %arg8[%c0_28, %c0_29], %30 {strides = array<i32>} : memref<1x16xf32, #tpu.memory_space<vmem>>, vector<1x16xf32>,
    } else {
    }
    %c0 = arith.constant 0 : index
    %c0_1 = arith.constant 0 : index
    %c0_2 = arith.constant 0 : index
    %c0_3 = arith.constant 0 : index
    %3 = vector.load %arg3[%c0, %c0_1, %c0_2, %c0_3] : memref<1x1x16x32xbf16, #tpu.memory_space<vmem>>, vector<1x1x16x32xbf16>
    %4 = vector.shape_cast %3 : vector<1x1x16x32xbf16> to vector<16x32xbf16>
    %c0_4 = arith.constant 0 : index
    %c0_5 = arith.constant 0 : index
    %c0_6 = arith.constant 0 : index
    %c0_7 = arith.constant 0 : index
    %5 = vector.load %arg4[%c0_4, %c0_5, %c0_6, %c0_7] : memref<1x1x16x32xbf16, #tpu.memory_space<vmem>>, vector<1x1x16x32xbf16>
    %6 = vector.shape_cast %5 : vector<1x1x16x32xbf16> to vector<16x32xbf16>
    %c0_8 = arith.constant 0 : index
    %c0_9 = arith.constant 0 : index
    %7 = vector.load %arg5[%c0_8, %c0_9] : memref<16x16xbf16, #tpu.memory_space<vmem>>, vector<16x16xbf16>
    %cst = arith.constant dense<0.000000e+00> : vector<16x16xf32>
    %8 = tpu.matmul %6, %4, %cst {dimension_numbers = #tpu.dot_dimension_numbers<[1], [1], [0], [0], [0, 0, 1, 0], [], []>} : vector<16x32xbf16>, vector<16x32xbf16>, vector<16x16xf32> -> vector<16x16xf32>
    %cst_10 = arith.constant 0.000000e+00 : bf16
    %9 = vector.broadcast %cst_10 : bf16 to vector<16x16xbf16>
    %10 = arith.cmpf ogt, %7, %9 : vector<16x16xbf16>
    %cst_11 = arith.constant 0xFF800000 : f32
    %11 = vector.broadcast %cst_11 : f32 to vector<16x16xf32>
    %12 = arith.select %10, %8, %11 : vector<16x16xi1>, vector<16x16xf32>
    %cst_12 = arith.constant dense<0xFF800000> : vector<16xf32>
    %13 = vector.multi_reduction <maximumf>, %12, %cst_12 [0] : vector<16x16xf32> to vector<16xf32>
    %14 = vector.shape_cast %13 : vector<16xf32> to vector<1x16xf32>
    %15 = arith.extf %7 : vector<16x16xbf16> to vector<16x16xf32>
    %16 = arith.mulf %8, %15 : vector<16x16xf32>
    %cst_13 = arith.constant dense<0.000000e+00> : vector<16xf32>
    %17 = vector.multi_reduction <add>, %16, %cst_13 [0] : vector<16x16xf32> to vector<16xf32>
    %18 = vector.shape_cast %17 : vector<16xf32> to vector<1x16xf32>
    %c0_14 = arith.constant 0 : index
    %c0_15 = arith.constant 0 : index
    %19 = vector.load %arg7[%c0_14, %c0_15] : memref<1x16xf32, #tpu.memory_space<vmem>>, vector<1x16xf32>
    %20 = arith.maximumf %19, %14 : vector<1x16xf32>
    %c0_16 = arith.constant 0 : index
    %c0_17 = arith.constant 0 : index
    %21 = vector.load %arg7[%c0_16, %c0_17] : memref<1x16xf32, #tpu.memory_space<vmem>>, vector<1x16xf32>
    tpu.vector_store %arg7[%c0_16, %c0_17], %20 {strides = array<i32>} : memref<1x16xf32, #tpu.memory_space<vmem>>, vector<1x16xf32>,
    %c0_18 = arith.constant 0 : index
    %c0_19 = arith.constant 0 : index
    %22 = vector.load %arg8[%c0_18, %c0_19] : memref<1x16xf32, #tpu.memory_space<vmem>>, vector<1x16xf32>
    %23 = arith.addf %22, %18 : vector<1x16xf32>
    %c0_20 = arith.constant 0 : index
    %c0_21 = arith.constant 0 : index
    %24 = vector.load %arg8[%c0_20, %c0_21] : memref<1x16xf32, #tpu.memory_space<vmem>>, vector<1x16xf32>
    tpu.vector_store %arg8[%c0_20, %c0_21], %23 {strides = array<i32>} : memref<1x16xf32, #tpu.memory_space<vmem>>, vector<1x16xf32>,
    %c0_i32_22 = arith.constant 0 : i32
    %25 = arith.cmpi eq, %arg2, %c0_i32_22 : i32
    %26 = arith.extui %25 : i1 to i32
    %c0_i32_23 = arith.constant 0 : i32
    %27 = arith.cmpi ne, %26, %c0_i32_23 : i32
    scf.if %27 {
      %c0_24 = arith.constant 0 : index
      %c0_25 = arith.constant 0 : index
      %28 = vector.load %arg7[%c0_24, %c0_25] : memref<1x16xf32, #tpu.memory_space<vmem>>, vector<1x16xf32>
      %c0_26 = arith.constant 0 : index
      %c0_27 = arith.constant 0 : index
      %29 = vector.load %arg8[%c0_26, %c0_27] : memref<1x16xf32, #tpu.memory_space<vmem>>, vector<1x16xf32>
      %cst_28 = arith.constant 6.250000e-02 : f32
      %30 = vector.broadcast %cst_28 : f32 to vector<1x16xf32>
      %31 = arith.mulf %29, %30 : vector<1x16xf32>
      %32 = arith.subf %28, %31 : vector<1x16xf32>
      %c0_29 = arith.constant 0 : index
      %c0_30 = arith.constant 0 : index
      %c0_31 = arith.constant 0 : index
      %c0_32 = arith.constant 0 : index
      %33 = vector.load %arg6[%c0_29, %c0_30, %c0_31, %c0_32] : memref<1x1x1x16xf32, #tpu.memory_space<vmem>>, vector<1x1x1x16xf32>
      %34 = vector.shape_cast %33 : vector<1x1x1x16xf32> to vector<1x16xf32>
      %35 = vector.shape_cast %32 : vector<1x16xf32> to vector<1x1x1x16xf32>
      tpu.vector_store %arg6[%c0_29, %c0_30, %c0_31, %c0_32], %35 {strides = array<i32>} : memref<1x1x1x16xf32, #tpu.memory_space<vmem>>, vector<1x1x1x16xf32>,
    } else {
    }
    return
  }
  func.func @transform_0(%arg0: i32, %arg1: i32, %arg2: i32) -> (i32, i32, i32, i32) {
    %c0_i32 = arith.constant 0 : i32
    %c0_i32_0 = arith.constant 0 : i32
    %c0_i32_1 = arith.constant 0 : i32
    return %arg0, %arg1, %c0_i32, %c0_i32_0 : i32, i32, i32, i32
  }
  func.func @transform_1(%arg0: i32, %arg1: i32, %arg2: i32) -> (i32, i32, i32, i32) {
    %c0_i32 = arith.constant 0 : i32
    %c0_i32_0 = arith.constant 0 : i32
    return %arg0, %arg1, %arg2, %c0_i32 : i32, i32, i32, i32
  }
  func.func @transform_2(%arg0: i32, %arg1: i32, %arg2: i32) -> (i32, i32) {
    %c0_i32 = arith.constant 0 : i32
    %c0_i32_0 = arith.constant 0 : i32
    return %arg2, %c0_i32 : i32, i32
  }
  func.func @transform_3(%arg0: i32, %arg1: i32, %arg2: i32) -> (i32, i32, i32, i32) {
    %c0_i32 = arith.constant 0 : i32
    %c0_i32_0 = arith.constant 0 : i32
    %c0_i32_1 = arith.constant 0 : i32
    return %arg0, %arg1, %c0_i32, %c0_i32_0 : i32, i32, i32, i32
  }
}

</mosaic_0001>

<llo_original>
// kernel: tpu_custom_call.1
$region0: #{tpu_custom_call.1}
  #allocation0 [shape = 'u32[]', space=smem, size = 0x4, offset = 0x4, fixed_abs, tag = 'smem constant byte address 0x4 - core index']
  #allocation1 [shape = 'u32[144,128]{1,0:T(1,128)}', space=vmem, size = 0x12000, scoped, tag = 'internal scratch']
  #allocation2 [shape = 'f32[1,16]{1,0:T(1,128)}', space=vmem, size = 0x200, scoped, tag = 'scratch operand']
  #allocation3 [shape = 'f32[1,16]{1,0:T(1,128)}', space=vmem, size = 0x200, scoped, tag = 'scratch operand']
  %s0 = inlined_call_operand.hbm [shape: bf16[2,4,16,32], index: 0, kind: input, shape index: {}]
  %s1 = inlined_call_operand.hbm [shape: bf16[2,4,16,32], index: 1, kind: input, shape index: {}]
  %s2 = inlined_call_operand.hbm [shape: bf16[16,16], index: 2, kind: input, shape index: {}]
  %s3 = inlined_call_operand.hbm [shape: f32[2,4,1,16], index: 3, kind: output, shape index: {}]
  %s4 = sld [smem:[#allocation0]]
  $region65: #{tpu_custom_call.1} parent=0
    _
  %s6 = ssub.s32 1, %s4
  %s7 = scalar_select 0, %s6, %s4
  $region1: #{tpu_custom_call.1} parent=0
    #allocation4 [shape = 'u8[8192]{0}', space=vmem, size = 0x2000, scoped, tag = 'input window, operand 0']
    #allocation5 [shape = 's32[2]{0}', space=sflag, size = 0x8, scoped, tag = 'scoped memory for tpu_custom_call.1']
    #allocation6 [shape = 's32[2]{0}', space=sflag, size = 0x8, scoped, tag = 'scoped memory for tpu_custom_call.1']
    #allocation7 [shape = 'u8[8192]{0}', space=vmem, size = 0x2000, scoped, tag = 'input window, operand 1']
    #allocation8 [shape = 's32[2]{0}', space=sflag, size = 0x8, scoped, tag = 'scoped memory for tpu_custom_call.1']
    #allocation9 [shape = 'u8[4096]{0}', space=vmem, size = 0x1000, scoped, tag = 'input window, operand 2, single buffered']
    #allocation10 [shape = 'u8[1024]{0}', space=vmem, size = 0x400, scoped, tag = 'output window, operand 0']
    %8 = vsyncpa [#allocation5], 0
    %s9 = scalar_lea.sflag [#allocation5], 1
    %10 = vsyncpa %s9, 0
    %11 = vsyncpa [#allocation8], 0
    %s12 = scalar_lea.sflag [#allocation8], 1
    %13 = vsyncpa %s12, 0
    %14 = vsyncpa [#allocation6], 0
    %s15 = scalar_lea.sflag [#allocation6], 1
    %16 = vsyncpa %s15, 0
    loop: start=0, step=1, limit=10
    $region2: #{tpu_custom_call.1} parent=1 // loop_pre_header
      _
    $region3: #{tpu_custom_call.1} parent=1 // loop_header
      %s18 = sphi 0, %s22
      %p19 = scmp.ge.s32.totalorder %s18, 10
      %s25 = sphi 0, %s44
      %s26 = sphi 0, %s40
      %s27 = sphi 0, %s36
      %s28 = sphi 0, %s25
      %s29 = sphi 0, %s26
      %s30 = sphi 0, %s27
      %s31 = sphi 0, %s28
      %s32 = sphi 0, %s29
      %s33 = sphi 0, %s30
      %s49 = sphi 0, %s51
      %s52 = sphi 0, %s49
      %s53 = sphi 0, %s52
      %s69 = sphi 0, %s53
      %s79 = sphi 0, %s81
      %s82 = sphi 0, %s79
      %s83 = sphi 0, %s82
      %s99 = sphi 0, %s83
      %s105 = sphi 0, %s107
      %s108 = sphi 0, %s105
      %s109 = sphi 0, %s108
      %s125 = sphi 0, %s109
      %s133 = sphi 0, %s135
      %s136 = sphi 0, %s133
      %s137 = sphi 0, %s136
      %s153 = sphi 0, %s137
    $region4: #{tpu_custom_call.1} parent=1 // loop_header_branch
      %21 = sbr.rel (%p19) target = $region8
    $region5: #{tpu_custom_call.1} parent=1 // loop_body
      %s23 = ssub.s32 %s18, 1
      %s24 = ssub.s32 %s18, 2
      %s34 = sadd.s32 1, %s27
      %p35 = scmp.ge.s32.totalorder %s34, 1
      %s36 = scalar_select %p35, 0, %s34
      %s37 = sadd.s32 1, %s26
      %s38 = scalar_select %p35, %s37, %s26
      %p39 = scmp.ge.s32.totalorder %s38, 4
      %s40 = scalar_select %p39, 0, %s38
      %s41 = sadd.s32 1, %s25
      %s42 = scalar_select %p39, %s41, %s25
      %p43 = scmp.ge.s32.totalorder %s42, 2
      %s44 = scalar_select %p43, 0, %s42
      %s45 = ssub.s32 %s25, %s44
      %s46 = ssub.s32 %s26, %s40
      %s47 = sor.u32 %s45, %s46
      %p48 = scmp.eq.s32.totalorder %s47, 0
      %s50 = sadd.s32 %s49, 1
      %s51 = scalar_select %p48, %s49, %s50
      %p54 = pneg %p48
      %p55 = scmp.eq.s32.totalorder %s18, 7
      %p56 = por %p54, %p55
      %p57 = scmp.ne.s32.totalorder %s49, %s52
      %p58 = scmp.eq.s32.totalorder %s18, 0
      %p59 = por %p57, %p58
      %p60 = scmp.ne.s32.totalorder %s49, %s52
      %p61 = scmp.eq.s32.totalorder %s23, 7
      %p62 = por %p60, %p61
      %p63 = scmp.ne.s32.totalorder %s52, %s53
      %p64 = scmp.eq.s32.totalorder %s23, 0
      %p65 = por %p63, %p64
      %p66 = scmp.ne.s32.totalorder %s52, %s53
      %p67 = scmp.eq.s32.totalorder %s24, 7
      %p68 = por %p66, %p67
      %p70 = scmp.ne.s32.totalorder %s53, %s69
      %p71 = scmp.eq.s32.totalorder %s24, 0
      %p72 = por %p70, %p71
      %s73 = ssub.s32 %s25, %s44
      %s74 = ssub.s32 %s26, %s40
      %s75 = sor.u32 %s73, %s74
      %s76 = ssub.s32 %s27, %s36
      %s77 = sor.u32 %s75, %s76
      %p78 = scmp.eq.s32.totalorder %s77, 0
      %s80 = sadd.s32 %s79, 1
      %s81 = scalar_select %p78, %s79, %s80
      %p84 = pneg %p78
      %p85 = scmp.eq.s32.totalorder %s18, 7
      %p86 = por %p84, %p85
      %p87 = scmp.ne.s32.totalorder %s79, %s82
      %p88 = scmp.eq.s32.totalorder %s18, 0
      %p89 = por %p87, %p88
      %p90 = scmp.ne.s32.totalorder %s79, %s82
      %p91 = scmp.eq.s32.totalorder %s23, 7
      %p92 = por %p90, %p91
      %p93 = scmp.ne.s32.totalorder %s82, %s83
      %p94 = scmp.eq.s32.totalorder %s23, 0
      %p95 = por %p93, %p94
      %p96 = scmp.ne.s32.totalorder %s82, %s83
      %p97 = scmp.eq.s32.totalorder %s24, 7
      %p98 = por %p96, %p97
      %p100 = scmp.ne.s32.totalorder %s83, %s99
      %p101 = scmp.eq.s32.totalorder %s24, 0
      %p102 = por %p100, %p101
      %s103 = ssub.s32 %s27, %s36
      %p104 = scmp.eq.s32.totalorder %s103, 0
      %s106 = sadd.s32 %s105, 1
      %s107 = scalar_select %p104, %s105, %s106
      %p110 = pneg %p104
      %p111 = scmp.eq.s32.totalorder %s18, 7
      %p112 = por %p110, %p111
      %p113 = scmp.ne.s32.totalorder %s105, %s108
      %p114 = scmp.eq.s32.totalorder %s18, 0
      %p115 = por %p113, %p114
      %p116 = scmp.ne.s32.totalorder %s105, %s108
      %p117 = scmp.eq.s32.totalorder %s23, 7
      %p118 = por %p116, %p117
      %p119 = scmp.ne.s32.totalorder %s108, %s109
      %p120 = scmp.eq.s32.totalorder %s23, 0
      %p121 = por %p119, %p120
      %p122 = scmp.ne.s32.totalorder %s108, %s109
      %p123 = scmp.eq.s32.totalorder %s24, 7
      %p124 = por %p122, %p123
      %p126 = scmp.ne.s32.totalorder %s109, %s125
      %p127 = scmp.eq.s32.totalorder %s24, 0
      %p128 = por %p126, %p127
      %s129 = ssub.s32 %s25, %s44
      %s130 = ssub.s32 %s26, %s40
      %s131 = sor.u32 %s129, %s130
      %p132 = scmp.eq.s32.totalorder %s131, 0
      %s134 = sadd.s32 %s133, 1
      %s135 = scalar_select %p132, %s133, %s134
      %p138 = pneg %p132
      %p139 = scmp.eq.s32.totalorder %s18, 7
      %p140 = por %p138, %p139
      %p141 = scmp.ne.s32.totalorder %s133, %s136
      %p142 = scmp.eq.s32.totalorder %s18, 0
      %p143 = por %p141, %p142
      %p144 = scmp.ne.s32.totalorder %s133, %s136
      %p145 = scmp.eq.s32.totalorder %s23, 7
      %p146 = por %p144, %p145
      %p147 = scmp.ne.s32.totalorder %s136, %s137
      %p148 = scmp.eq.s32.totalorder %s23, 0
      %p149 = por %p147, %p148
      %p150 = scmp.ne.s32.totalorder %s136, %s137
      %p151 = scmp.eq.s32.totalorder %s24, 7
      %p152 = por %p150, %p151
      %p154 = scmp.ne.s32.totalorder %s137, %s153
      %p155 = scmp.eq.s32.totalorder %s24, 0
      %p156 = por %p154, %p155
      %p157 = scmp.le.s32.totalorder 1, %s18
      %p158 = scmp.lt.s32.totalorder %s18, 9
      %p159 = pnand %p157, %p158
      %p160 = pneg %p159
      // Predicated region
      $region9: #{tpu_custom_call.1} parent=5 // pred_check
        _
      $region10: #{tpu_custom_call.1} parent=5 // pred_check_branch
        %162 = sbr.rel (%p159) target = $region12
      $region11: #{tpu_custom_call.1} parent=5 // pred_region
        %s163 = ssub.s32 %s18, 1
        // Predicated region
        $region13: #{tpu_custom_call.1} parent=11 // pred_check
          %p164 = pneg %p121
        $region14: #{tpu_custom_call.1} parent=11 // pred_check_branch
          %166 = sbr.rel (%p164) target = $region16
        $region15: #{tpu_custom_call.1} parent=11 // pred_region
          %s167 = smul.u32 2, %s30
          %s169 = ssub.s32 128, 128
          %170 = vsyncadd [#allocation8], %s169
          %s171 = smul.addr %s167, 64
          %s172 = scalar_lea.hbm %s2, %s171
          %s173 = sshll.u32 [#allocation9], 4
          %s174 = int_to_ptr.vmem [resolvable:$true] %s173
          %179 = dma.hbm_to_vmem [thread:$0]  %s172, 128, %s174, [#allocation8], 64, 64, 4
        $region16: #{tpu_custom_call.1} parent=11 // pred_fallthru
          _
      $region12: #{tpu_custom_call.1} parent=5 // pred_fallthru
        _
      %p180 = scmp.lt.s32.totalorder %s18, 8
      // Predicated region
      $region17: #{tpu_custom_call.1} parent=5 // pred_check
        %p181 = pneg %p180
      $region18: #{tpu_custom_call.1} parent=5 // pred_check_branch
        %183 = sbr.rel (%p181) target = $region20
      $region19: #{tpu_custom_call.1} parent=5 // pred_region
        // Predicated region
        $region21: #{tpu_custom_call.1} parent=19 // pred_check
          %p184 = pneg %p59
        $region22: #{tpu_custom_call.1} parent=19 // pred_check_branch
          %186 = sbr.rel (%p184) target = $region24
        $region23: #{tpu_custom_call.1} parent=19 // pred_region
          %s187 = sand.u32 %s49, 1
          %s188 = scalar_lea.sflag [#allocation5], %s187
          %s189 = sand.u32 %s49, 1
          %s190 = smul.addr %s189, 8
          %s191 = scalar_lea.vmem [#allocation4], %s190
          %s193 = ssub.s32 128, 128
          %194 = vsyncadd %s188, %s193
          %s195 = smul.addr %s26, 2
          %s196 = smul.addr %s25, 8
          %s197 = sadd.s32 %s195, %s196
          %s198 = smul.addr %s197, 64
          %s199 = scalar_lea.hbm %s0, %s198
          %s200 = sshll.u32 %s191, 4
          %s201 = int_to_ptr.vmem [resolvable:$true] %s200
          %206 = dma.hbm_to_vmem [thread:$0]  %s199, 128, %s201, %s188, 64, 64, 4
        $region24: #{tpu_custom_call.1} parent=19 // pred_fallthru
          _
        // Predicated region
        $region25: #{tpu_custom_call.1} parent=19 // pred_check
          %p207 = pneg %p89
        $region26: #{tpu_custom_call.1} parent=19 // pred_check_branch
          %209 = sbr.rel (%p207) target = $region28
        $region27: #{tpu_custom_call.1} parent=19 // pred_region
          %s210 = sand.u32 %s18, 1
          %s211 = scalar_lea.sflag [#allocation8], %s210
          %s212 = sand.u32 %s79, 1
          %s213 = smul.addr %s212, 8
          %s214 = scalar_lea.vmem [#allocation7], %s213
          %s215 = smul.u32 2, %s27
          %s217 = ssub.s32 128, 128
          %218 = vsyncadd %s211, %s217
          %s219 = smul.addr %s26, 2
          %s220 = sadd.s32 %s215, %s219
          %s221 = smul.addr %s25, 8
          %s222 = sadd.s32 %s220, %s221
          %s223 = smul.addr %s222, 64
          %s224 = scalar_lea.hbm %s1, %s223
          %s225 = sshll.u32 %s214, 4
          %s226 = int_to_ptr.vmem [resolvable:$true] %s225
          %231 = dma.hbm_to_vmem [thread:$0]  %s224, 128, %s226, %s211, 64, 64, 4
        $region28: #{tpu_custom_call.1} parent=19 // pred_fallthru
          _
      $region20: #{tpu_custom_call.1} parent=5 // pred_fallthru
        _
      %p232 = scmp.le.s32.totalorder 1, %s18
      %p233 = scmp.lt.s32.totalorder %s18, 9
      %p234 = pnand %p232, %p233
      %p235 = pneg %p234
      // Predicated region
      $region29: #{tpu_custom_call.1} parent=5 // pred_check
        _
      $region30: #{tpu_custom_call.1} parent=5 // pred_check_branch
        %237 = sbr.rel (%p234) target = $region32
      $region31: #{tpu_custom_call.1} parent=5 // pred_region
        %s238 = ssub.s32 %s18, 1
        %s239 = sand.u32 %s52, 1
        %s240 = scalar_lea.sflag [#allocation5], %s239
        %s241 = sand.u32 %s52, 1
        %s242 = smul.addr %s241, 8
        %s243 = scalar_lea.vmem [#allocation4], %s242
        // Predicated region
        $region33: #{tpu_custom_call.1} parent=31 // pred_check
          %p244 = pneg %p65
        $region34: #{tpu_custom_call.1} parent=31 // pred_check_branch
          %246 = sbr.rel (%p244) target = $region36
        $region35: #{tpu_custom_call.1} parent=31 // pred_region
          %247 = dma.done %s240, 128
        $region36: #{tpu_custom_call.1} parent=31 // pred_fallthru
          _
        %s248 = sand.u32 %s23, 1
        %s249 = scalar_lea.sflag [#allocation8], %s248
        %s250 = sand.u32 %s82, 1
        %s251 = smul.addr %s250, 8
        %s252 = scalar_lea.vmem [#allocation7], %s251
        // Predicated region
        $region37: #{tpu_custom_call.1} parent=31 // pred_check
          %p253 = pneg %p95
        $region38: #{tpu_custom_call.1} parent=31 // pred_check_branch
          %255 = sbr.rel (%p253) target = $region40
        $region39: #{tpu_custom_call.1} parent=31 // pred_region
          %256 = dma.done %s249, 128
        $region40: #{tpu_custom_call.1} parent=31 // pred_fallthru
          _
        // Predicated region
        $region41: #{tpu_custom_call.1} parent=31 // pred_check
          %p257 = pneg %p121
        $region42: #{tpu_custom_call.1} parent=31 // pred_check_branch
          %259 = sbr.rel (%p257) target = $region44
        $region43: #{tpu_custom_call.1} parent=31 // pred_region
          %260 = dma.done [#allocation8], 128
        $region44: #{tpu_custom_call.1} parent=31 // pred_fallthru
          _
        %s261 = sand.u32 %s52, 1
        %s262 = scalar_lea.sflag [#allocation5], %s261
        %s263 = sand.u32 %s52, 1
        %s264 = smul.addr %s263, 8
        %s265 = scalar_lea.vmem [#allocation4], %s264
        %p266 = pneg %p65
        %p267 = pneg %p62
        %s268 = sand.u32 %s23, 1
        %s269 = scalar_lea.sflag [#allocation8], %s268
        %s270 = sand.u32 %s82, 1
        %s271 = smul.addr %s270, 8
        %s272 = scalar_lea.vmem [#allocation7], %s271
        %p273 = pneg %p95
        %p274 = pneg %p92
        %p275 = pneg %p121
        %p276 = pneg %p118
        %p277 = pneg %p149
        %p278 = pneg %p146
        %s279 = sand.u32 %s136, 1
        %s280 = scalar_lea.sflag [#allocation6], %s279
        %s281 = sand.u32 %s136, 1
        %s282 = scalar_lea.vmem [#allocation10], %s281
        %s283 = smul.u32 2, %s30
        %s284 = smul.u32 2, %s30
        %p288 = scmp.eq.s32.totalorder %s30, 0
        // Predicated region
        $region45: #{tpu_custom_call.1} parent=31 // pred_check
          %p289 = pneg %p288
        $region46: #{tpu_custom_call.1} parent=31 // pred_check_branch
          %291 = sbr.rel (%p289) target = $region48
        $region47: #{tpu_custom_call.1} parent=31 // pred_region
          %vm292 = vcmask 122880
          %293 = vst.msk [vmem:[#allocation2] sm:$0x1] %vm292, -inf
          %294 = vst.msk [vmem:[#allocation3] sm:$0x1] %vm292, 0.0
        $region48: #{tpu_custom_call.1} parent=31 // pred_fallthru
          _
        %v295 = vld [vmem:[%s243] sm:$0xf]
        %v296 = vld [vmem:[%s243 + $0x4] sm:$0xf]
        %v297 = vld [vmem:[%s252] sm:$0xf]
        %v298 = vld [vmem:[%s252 + $0x4] sm:$0xf]
        %v299 = vld [vmem:[#allocation9] sm:$0xf]
        %v300 = vld [vmem:[#allocation9 + $0x4] sm:$0xf]
        %v303 = vunpack.c.l.b16 %v297
        %v304 = vunpack.c.l.b16 %v298
        %v305 = vpack.c.b16 %v304, %v303
        %v308 = vunpack.c.l.b16 %v295
        %v309 = vunpack.c.l.b16 %v296
        %v310 = vpack.c.b16 %v309, %v308
        %vm311 = vcmask 261120
        %v313 = vsel %vm311, %v305, 0
        %v316 = vsel %vm311, %v310, 0
        %318 = vmatprep.subr.bf16.mxu0 0
        %319 = vmatpush1.bf16.xpose.msra.mxu0 0
        %320 = vmatprep.subr.bf16.mxu0 0
        %321 = vmatpush1.bf16.xpose.msra.mxu0 0
        %322 = vmatprep.subr.bf16.mxu0 0
        %323 = vmatpush1.bf16.xpose.msra.mxu0 0
        %324 = vmatprep.subr.bf16.mxu0 0
        %325 = vmatpush1.bf16.xpose.msra.mxu0 0
        %326 = vmatprep.subr.bf16.mxu0 0
        %327 = vmatpush1.bf16.xpose.msra.mxu0 0
        %328 = vmatprep.subr.bf16.mxu0 0
        %329 = vmatpush1.bf16.xpose.msra.mxu0 0
        %330 = vmatprep.subr.bf16.mxu0 0
        %331 = vmatpush1.bf16.xpose.msra.mxu0 0
        %332 = vmatprep.subr.bf16.mxu0 0
        %333 = vmatpush1.bf16.xpose.msra.mxu0 %v316
        %334 = vmatprep.subr.bf16.mxu0 0
        %335 = vmatpush2.bf16.xpose.msra.mxu0 0
        %336 = vmatprep.subr.bf16.mxu0 0
        %337 = vmatpush2.bf16.xpose.msra.mxu0 0
        %338 = vmatprep.subr.bf16.mxu0 0
        %339 = vmatpush2.bf16.xpose.msra.mxu0 0
        %340 = vmatprep.subr.bf16.mxu0 0
        %341 = vmatpush2.bf16.xpose.msra.mxu0 0
        %342 = vmatprep.subr.bf16.mxu0 0
        %343 = vmatpush2.bf16.xpose.msra.mxu0 0
        %344 = vmatprep.subr.bf16.mxu0 0
        %345 = vmatpush2.bf16.xpose.msra.mxu0 0
        %346 = vmatprep.subr.bf16.mxu0 0
        %347 = vmatpush2.bf16.xpose.msra.mxu0 0
        %348 = vmatprep.subr.bf16.mxu0 0
        %349 = vmatpush2.bf16.xpose.msra.mxu0 0
        %350 = vmatprep.mubr.bf16.mxu0 0
        %351 = vmatmul.mubr.bf16.gmra.mxu0 %v313
        %v352 = vpop.f32.mrf.mxu0
        %v353 = vadd.f32 0.0, %v352
        %v354 = vpop.f32.mrf.mxu0
        %v355 = vpop.f32.mrf.mxu0
        %v356 = vadd.f32 0.0, %v355
        %v357 = vpop.f32.mrf.mxu0
        %358 = vdwg.mxu0
        %vm359 = vcmp.gt.bf16.partialorder %v299, 0
        %vm360 = vcmp.gt.bf16.partialorder %v300, 0
        %v361 = vsel %vm359, 65537, 0
        %v362 = vsel %vm360, 65537, 0
        %v363 = vunpack.c.l.b16 %v361
        %v364 = vunpack.c.l.b16 %v362
        %vm365 = vcmp.ne.s32.totalorder %v363, 0
        %vm366 = vcmp.ne.s32.totalorder %v364, 0
        %v367 = vsel %vm365, %v353, -inf
        %v368 = vsel %vm366, %v356, -inf
        %vm369 = vcmask 130048
        %v370 = vsel %vm369, %v367, -inf
        %v371 = vsel %vm369, %v368, -inf
        %v372 = vmax.f32 %v370, %v371
        %v373 = vrot.slane %v372, 4
        %v374 = vmax.f32 %v372, %v373
        %v375 = vrot.slane %v374, 2
        %v376 = vmax.f32 %v374, %v375
        %v377 = vrot.slane %v376, 1
        %v378 = vmax.f32 %v376, %v377
        %v379 = vunpack.c.l.bf16 %v299
        %v380 = vunpack.c.l.bf16 %v300
        %v381 = vmul.f32 %v353, %v379
        %v382 = vmul.f32 %v356, %v380
        %v383 = vsel %vm369, %v381, 0.0
        %v384 = vsel %vm369, %v382, 0.0
        %v385 = vadd.f32 %v383, %v384
        %v386 = vrot.slane %v385, 4
        %v387 = vadd.f32 %v385, %v386
        %v388 = vrot.slane %v387, 2
        %v389 = vadd.f32 %v387, %v388
        %v390 = vrot.slane %v389, 1
        %v391 = vadd.f32 %v389, %v390
        %v392 = vld [vmem:[#allocation2] sm:$0x1]
        %v393 = vmax.f32 %v392, %v378
        %vm394 = vcmask 122880
        %395 = vst.msk [vmem:[#allocation2] sm:$0x1] %vm394, %v393
        %v396 = vld [vmem:[#allocation3] sm:$0x1]
        %v397 = vadd.f32 %v396, %v391
        %398 = vst.msk [vmem:[#allocation3] sm:$0x1] %vm394, %v397
        // Predicated region
        $region49: #{tpu_custom_call.1} parent=31 // pred_check
          %p399 = pneg %p288
        $region50: #{tpu_custom_call.1} parent=31 // pred_check_branch
          %401 = sbr.rel (%p399) target = $region52
        $region51: #{tpu_custom_call.1} parent=31 // pred_region
          %v402 = vld [vmem:[#allocation2] sm:$0x1]
          %v403 = vld [vmem:[#allocation3] sm:$0x1]
          %v404 = vmul.f32 %v403, 0.0625
          %v405 = vsub.f32 %v402, %v404
          %406 = vst.msk [vmem:[%s282] sm:$0x1] %vm394, %v405
        $region52: #{tpu_custom_call.1} parent=31 // pred_fallthru
          _
        %s407 = sand.u32 %s136, 1
        %s408 = scalar_lea.sflag [#allocation6], %s407
        %s409 = sand.u32 %s136, 1
        %s410 = scalar_lea.vmem [#allocation10], %s409
        // Predicated region
        $region53: #{tpu_custom_call.1} parent=31 // pred_check
          %p411 = pneg %p146
        $region54: #{tpu_custom_call.1} parent=31 // pred_check_branch
          %413 = sbr.rel (%p411) target = $region56
        $region55: #{tpu_custom_call.1} parent=31 // pred_region
          %s415 = ssub.s32 16, 16
          %416 = vsyncadd %s408, %s415
          %s417 = smul.addr %s28, 4
          %s418 = sadd.s32 %s29, %s417
          %s419 = smul.addr %s418, 16
          %s420 = scalar_lea.hbm %s3, %s419
          %s422 = sshll.u32 %s410, 4
          %s423 = int_to_ptr.vmem [resolvable:$true] %s422
          %425 = dma.vmem_to_hbm [thread:$0]  %s423, 16, %s420, %s408
        $region56: #{tpu_custom_call.1} parent=31 // pred_fallthru
          _
      $region32: #{tpu_custom_call.1} parent=5 // pred_fallthru
        _
      %p426 = scmp.le.s32.totalorder 2, %s18
      // Predicated region
      $region57: #{tpu_custom_call.1} parent=5 // pred_check
        %p427 = pneg %p426
      $region58: #{tpu_custom_call.1} parent=5 // pred_check_branch
        %429 = sbr.rel (%p427) target = $region60
      $region59: #{tpu_custom_call.1} parent=5 // pred_region
        %s430 = ssub.s32 %s18, 2
        // Predicated region
        $region61: #{tpu_custom_call.1} parent=59 // pred_check
          %p431 = pneg %p152
        $region62: #{tpu_custom_call.1} parent=59 // pred_check_branch
          %433 = sbr.rel (%p431) target = $region64
        $region63: #{tpu_custom_call.1} parent=59 // pred_region
          %s434 = sand.u32 %s137, 1
          %s435 = scalar_lea.sflag [#allocation6], %s434
          %s436 = sand.u32 %s137, 1
          %s437 = scalar_lea.vmem [#allocation10], %s436
          %438 = dma.done %s435, 16
        $region64: #{tpu_custom_call.1} parent=59 // pred_fallthru
          _
      $region60: #{tpu_custom_call.1} parent=5 // pred_fallthru
        _
    $region6: #{tpu_custom_call.1} parent=1 // loop_footer
      %s22 = sadd.s32 1, %s18
    $region7: #{tpu_custom_call.1} parent=1 // loop_footer_branch
      %17 = sbr.rel target = $region3
    $region8: #{tpu_custom_call.1} parent=1 // loop_exit
      _
    %439 = vsyncpa [#allocation5], 1
    %s440 = scalar_lea.sflag [#allocation5], 1
    %441 = vsyncpa %s440, 1
    %442 = vsyncpa [#allocation8], 1
    %s443 = scalar_lea.sflag [#allocation8], 1
    %444 = vsyncpa %s443, 1
    %445 = vsyncpa [#allocation6], 1
    %s446 = scalar_lea.sflag [#allocation6], 1
    %447 = vsyncpa %s446, 1

</llo_original>
